<compile_context>
chip_gen: v7x
topology: tpu7x:2x2x1
jax: 0.10.0
libtpu: 0.0.40
codegen_flags: <defaults>
</compile_context>

<pallas_src>
import functools
import math

import numpy as np
import jax
import jax.numpy as jnp
from jax.experimental import pallas as pl
from jax.experimental.pallas import tpu as pltpu

BN_EPS = 1e-5


def block2d_kernel(x_ref, scale_ref, shift_ref, w_ref, mask_ref, o_ref, *,
                   H, W, Cin, Cout, KH, KW, P, negative_slope):
    """Fused BN(eval) -> 3x3 'same' conv (shift-and-matmul) -> LeakyReLU.

    x_ref:     (Bt, Cin, H*W)       CHW-flat activations for this batch tile
    scale_ref: (Cin, 1)             gamma / sqrt(var + eps)           (f32)
    shift_ref: (Cin, 1)             beta - mean * scale               (f32)
    w_ref:     (KH*KW, Cout, Cin)   per-tap conv weights              (bf16)
    mask_ref:  (KH*KW, 1, H*W)      {0,1} border-validity masks       (f32)
    o_ref:     (Bt, Cout, H*W)      lane-dense output rows
    """
    Bt = x_ref.shape[0]
    HW = H * W
    PADL = P * (W + 1)                      # max |flattened tap offset|
    mxu_dtype = w_ref.dtype

    for b in range(Bt):                     # static, unrolled
        # Eval-mode BatchNorm folded to a per-channel affine, computed in f32.
        y = x_ref[b].astype(jnp.float32) * scale_ref[...] + shift_ref[...]  # (Cin, HW)

        # Zero-extend the flattened spatial row once so every tap below is a
        # static, in-bounds lane slice (no scratch round trip, no masked stores).
        zpad = jnp.zeros((Cin, PADL), jnp.float32)
        ypad = jnp.concatenate([zpad, y, zpad], axis=1)      # (Cin, HW + 2*PADL)

        acc = jnp.zeros((Cout, HW), jnp.float32)
        for kh in range(KH):
            for kw in range(KW):
                dh, dw = kh - P, kw - P
                t = kh * KW + kw
                off = dh * W + dw
                tap = ypad[:, PADL + off: PADL + off + HW]   # (Cin, HW) lane shift
                if dh != 0 or dw != 0:
                    # Kill row/column wrap-around -> exact Conv2d zero padding.
                    tap = tap * mask_ref[t]
                acc = acc + jnp.dot(w_ref[t], tap.astype(mxu_dtype),
                                    preferred_element_type=jnp.float32)

        # Fused LeakyReLU; (Cout, HW) is lane-dense -> full-width stores.
        out = jnp.maximum(acc, negative_slope * acc)
        o_ref[b] = out.astype(o_ref.dtype)


def _pick_batch_tile(batch, per_image_bytes, *, target_bytes=64 * 1024, min_steps=4):
    """Largest divisor of `batch` giving ~target_bytes of activations per grid
    step while keeping at least min(min_steps, batch) grid steps for
    pipelining / megacore."""
    limit = max(1, min(batch, target_bytes // max(per_image_bytes, 1)))
    limit = min(limit, max(1, batch // min(min_steps, batch)))
    bt = 1
    for d in range(1, limit + 1):
        if batch % d == 0:
            bt = d
    return bt


def block2d_forward(x_nchw, conv_w, bn_gamma, bn_beta, bn_mean, bn_var, *,
                    padding=1, eps=BN_EPS, negative_slope=0.1,
                    mxu_dtype=jnp.bfloat16, batch_tile=None):
    """Block2D forward (eval-mode BN). x_nchw: (B,Cin,H,W); conv_w: (Cout,Cin,KH,KW)."""
    B, Cin, H, W = x_nchw.shape
    Cout, Cin2, KH, KW = conv_w.shape
    assert Cin2 == Cin
    P = padding
    Ho = H + 2 * P - KH + 1
    Wo = W + 2 * P - KW + 1
    # TODO(synk): only 'same' convolutions (stride 1, padding=(k-1)//2, the
    # Block2D default) are supported by the shift-and-matmul formulation.
    assert (Ho, Wo) == (H, W), "Block2D kernel requires padding == (kernel_size - 1) // 2"
    HW = H * W
    f32 = jnp.float32

    # Fold eval-mode BN into a per-channel affine, applied in-kernel in f32.
    inv_std = jax.lax.rsqrt(bn_var.astype(f32) + eps)
    scale = (bn_gamma.astype(f32) * inv_std).reshape(Cin, 1)
    shift = (bn_beta.astype(f32)
             - bn_mean.astype(f32) * bn_gamma.astype(f32) * inv_std).reshape(Cin, 1)

    # CHW-flat activations: free reshape of NCHW, spatial H*W on the lane axis.
    x_flat = x_nchw.reshape(B, Cin, HW)

    # Per-tap weights (no im2col): w_taps[kh*KW+kw] = conv_w[:, :, kh, kw]  (Cout, Cin).
    w_taps = jnp.transpose(conv_w, (2, 3, 0, 1)).reshape(KH * KW, Cout, Cin).astype(mxu_dtype)

    # Compile-time {0,1} border masks per tap and flattened output position.
    oh, ow = np.meshgrid(np.arange(H), np.arange(W), indexing="ij")
    oh, ow = oh.reshape(-1), ow.reshape(-1)
    masks = np.ones((KH * KW, 1, HW), np.float32)
    for kh in range(KH):
        for kw in range(KW):
            dh, dw = kh - P, kw - P
            ok = (oh + dh >= 0) & (oh + dh < H) & (ow + dw >= 0) & (ow + dw < W)
            masks[kh * KW + kw, 0, :] = ok.astype(np.float32)
    masks = jnp.asarray(masks)

    if batch_tile is None:
        batch_tile = _pick_batch_tile(B, Cin * HW * x_nchw.dtype.itemsize)
    assert B % batch_tile == 0
    grid = (B // batch_tile,)

    kernel = functools.partial(
        block2d_kernel, H=H, W=W, Cin=Cin, Cout=Cout, KH=KH, KW=KW, P=P,
        negative_slope=negative_slope)

    out = pl.pallas_call(
        kernel,
        out_shape=jax.ShapeDtypeStruct((B, Cout, HW), x_nchw.dtype),
        grid=grid,
        in_specs=[
            pl.BlockSpec((batch_tile, Cin, HW), lambda g: (g, 0, 0)),   # x (CHW-flat)
            pl.BlockSpec((Cin, 1), lambda g: (0, 0)),                   # BN scale
            pl.BlockSpec((Cin, 1), lambda g: (0, 0)),                   # BN shift
            pl.BlockSpec((KH * KW, Cout, Cin), lambda g: (0, 0, 0)),    # per-tap weights
            pl.BlockSpec((KH * KW, 1, HW), lambda g: (0, 0, 0)),        # border masks
        ],
        out_specs=pl.BlockSpec((batch_tile, Cout, HW), lambda g: (g, 0, 0)),
        compiler_params=pltpu.CompilerParams(dimension_semantics=("parallel",)),
    )(x_flat, scale, shift, w_taps, masks)

    # (B, Cout, H*W) -> NCHW for free (no transpose).
    return out.reshape(B, Cout, Ho, Wo)


if __name__ == "__main__":
    B, Cin, Cout, H, W = 2, 4, 8, 16, 16
    KH = KW = 3

    key = jax.random.PRNGKey(0)
    kx, kwt, kg, kb, km, kv = jax.random.split(key, 6)
    x = jax.random.normal(kx, (B, Cin, H, W), jnp.float32)
    fan_in = Cin * KH * KW
    conv_w = jax.random.normal(kwt, (Cout, Cin, KH, KW), jnp.float32) / math.sqrt(fan_in)
    bn_gamma = 1.0 + 0.1 * jax.random.normal(kg, (Cin,), jnp.float32)
    bn_beta = 0.1 * jax.random.normal(kb, (Cin,), jnp.float32)
    bn_mean = 0.1 * jax.random.normal(km, (Cin,), jnp.float32)
    bn_var = jax.random.uniform(kv, (Cin,), jnp.float32, minval=0.5, maxval=1.5)

    fwd = jax.jit(block2d_forward)
    out = jax.block_until_ready(fwd(x, conv_w, bn_gamma, bn_beta, bn_mean, bn_var))
    assert out.shape == (B, Cout, H, W)

    # Pure-JAX reference (same eval-mode semantics), f32 / HIGHEST precision.
    inv_std = jax.lax.rsqrt(bn_var + BN_EPS)
    xb = (x - bn_mean[None, :, None, None]) * (bn_gamma * inv_std)[None, :, None, None] \
         + bn_beta[None, :, None, None]
    ref = jax.lax.conv_general_dilated(
        xb, conv_w, window_strides=(1, 1), padding=((1, 1), (1, 1)),
        dimension_numbers=('NCHW', 'OIHW', 'NCHW'),
        precision=jax.lax.Precision.HIGHEST)
    ref = jnp.where(ref >= 0, ref, 0.1 * ref)

    # Tolerance covers the bf16 MXU operands (f32-accumulated); with
    # mxu_dtype=jnp.float32 the agreement is much tighter.
    err = float(jnp.max(jnp.abs(out - ref)))
    assert err < 5e-2, f"max abs error {err}"

    print("KERNEL_OK")
</pallas_src>

<mosaic_0001>
module attributes {stable_mosaic.version = 11 : i64} {
  func.func @block2d_kernel(%arg0: i32, %arg1: memref<1x4x256xf32, #tpu.memory_space<vmem>>, %arg2: memref<4x1xf32, #tpu.memory_space<vmem>>, %arg3: memref<4x1xf32, #tpu.memory_space<vmem>>, %arg4: memref<9x8x4xbf16, #tpu.memory_space<vmem>>, %arg5: memref<9x1x256xf32, #tpu.memory_space<vmem>>, %arg6: memref<1x8x256xf32, #tpu.memory_space<vmem>>) attributes {dimension_semantics = [#tpu.dimension_semantics<parallel>], iteration_bounds = array<i64: 2>, scalar_prefetch = 0 : i64, scratch_operands = 0 : i64, tpu.core_type = #tpu.core_type<tc>, window_params = [{transform_indices = @transform_0, window_bounds = array<i64: 1, 4, 256>}, {pipeline_mode = #tpu.pipeline_mode<synchronous>, transform_indices = @transform_1, window_bounds = array<i64: 4, 1>}, {pipeline_mode = #tpu.pipeline_mode<synchronous>, transform_indices = @transform_2, window_bounds = array<i64: 4, 1>}, {pipeline_mode = #tpu.pipeline_mode<synchronous>, transform_indices = @transform_3, window_bounds = array<i64: 9, 8, 4>}, {pipeline_mode = #tpu.pipeline_mode<synchronous>, transform_indices = @transform_4, window_bounds = array<i64: 9, 1, 256>}, {transform_indices = @transform_5, window_bounds = array<i64: 1, 8, 256>}]} {
    %c0 = arith.constant 0 : index
    %c0_0 = arith.constant 0 : index
    %c0_1 = arith.constant 0 : index
    %0 = vector.load %arg1[%c0, %c0_0, %c0_1] : memref<1x4x256xf32, #tpu.memory_space<vmem>>, vector<1x4x256xf32>
    %1 = vector.shape_cast %0 : vector<1x4x256xf32> to vector<4x256xf32>
    %c0_2 = arith.constant 0 : index
    %c0_3 = arith.constant 0 : index
    %2 = vector.load %arg2[%c0_2, %c0_3] : memref<4x1xf32, #tpu.memory_space<vmem>>, vector<4x1xf32>
    %3 = vector.broadcast %2 : vector<4x1xf32> to vector<4x256xf32>
    %4 = arith.mulf %1, %3 : vector<4x256xf32>
    %c0_4 = arith.constant 0 : index
    %c0_5 = arith.constant 0 : index
    %5 = vector.load %arg3[%c0_4, %c0_5] : memref<4x1xf32, #tpu.memory_space<vmem>>, vector<4x1xf32>
    %6 = vector.broadcast %5 : vector<4x1xf32> to vector<4x256xf32>
    %7 = arith.addf %4, %6 : vector<4x256xf32>
    %cst = arith.constant 0.000000e+00 : f32
    %8 = vector.broadcast %cst : f32 to vector<4x17xf32>
    %9 = tpu.concatenate %8, %7, %8 in 1 : vector<4x17xf32>, vector<4x256xf32>, vector<4x17xf32> -> vector<4x290xf32>
    %cst_6 = arith.constant 0.000000e+00 : f32
    %10 = vector.broadcast %cst_6 : f32 to vector<8x256xf32>
    %11 = vector.extract_strided_slice %9 {offsets = [0, 0], sizes = [4, 256], strides = [1, 1]} : vector<4x290xf32> to vector<4x256xf32>
    %c0_7 = arith.constant 0 : index
    %c0_8 = arith.constant 0 : index
    %c0_9 = arith.constant 0 : index
    %12 = vector.load %arg5[%c0_7, %c0_8, %c0_9] : memref<9x1x256xf32, #tpu.memory_space<vmem>>, vector<1x1x256xf32>
    %13 = vector.shape_cast %12 : vector<1x1x256xf32> to vector<1x256xf32>
    %14 = vector.broadcast %13 : vector<1x256xf32> to vector<4x256xf32>
    %15 = arith.mulf %11, %14 : vector<4x256xf32>
    %c0_10 = arith.constant 0 : index
    %c0_11 = arith.constant 0 : index
    %c0_12 = arith.constant 0 : index
    %16 = vector.load %arg4[%c0_10, %c0_11, %c0_12] : memref<9x8x4xbf16, #tpu.memory_space<vmem>>, vector<1x8x4xbf16>
    %17 = vector.shape_cast %16 : vector<1x8x4xbf16> to vector<8x4xbf16>
    %18 = arith.truncf %15 : vector<4x256xf32> to vector<4x256xbf16>
    %cst_13 = arith.constant dense<0.000000e+00> : vector<8x256xf32>
    %19 = tpu.matmul %17, %18, %cst_13 {dimension_numbers = #tpu.dot_dimension_numbers<[1], [0], [0], [1], [0, 0, 1, 1], [], []>} : vector<8x4xbf16>, vector<4x256xbf16>, vector<8x256xf32> -> vector<8x256xf32>
    %20 = arith.addf %10, %19 : vector<8x256xf32>
    %21 = vector.extract_strided_slice %9 {offsets = [0, 1], sizes = [4, 256], strides = [1, 1]} : vector<4x290xf32> to vector<4x256xf32>
    %c1 = arith.constant 1 : index
    %c0_14 = arith.constant 0 : index
    %c0_15 = arith.constant 0 : index
    %22 = vector.load %arg5[%c1, %c0_14, %c0_15] : memref<9x1x256xf32, #tpu.memory_space<vmem>>, vector<1x1x256xf32>
    %23 = vector.shape_cast %22 : vector<1x1x256xf32> to vector<1x256xf32>
    %24 = vector.broadcast %23 : vector<1x256xf32> to vector<4x256xf32>
    %25 = arith.mulf %21, %24 : vector<4x256xf32>
    %c1_16 = arith.constant 1 : index
    %c0_17 = arith.constant 0 : index
    %c0_18 = arith.constant 0 : index
    %26 = vector.load %arg4[%c1_16, %c0_17, %c0_18] : memref<9x8x4xbf16, #tpu.memory_space<vmem>>, vector<1x8x4xbf16>
    %27 = vector.shape_cast %26 : vector<1x8x4xbf16> to vector<8x4xbf16>
    %28 = arith.truncf %25 : vector<4x256xf32> to vector<4x256xbf16>
    %cst_19 = arith.constant dense<0.000000e+00> : vector<8x256xf32>
    %29 = tpu.matmul %27, %28, %cst_19 {dimension_numbers = #tpu.dot_dimension_numbers<[1], [0], [0], [1], [0, 0, 1, 1], [], []>} : vector<8x4xbf16>, vector<4x256xbf16>, vector<8x256xf32> -> vector<8x256xf32>
    %30 = arith.addf %20, %29 : vector<8x256xf32>
    %31 = vector.extract_strided_slice %9 {offsets = [0, 2], sizes = [4, 256], strides = [1, 1]} : vector<4x290xf32> to vector<4x256xf32>
    %c2 = arith.constant 2 : index
    %c0_20 = arith.constant 0 : index
    %c0_21 = arith.constant 0 : index
    %32 = vector.load %arg5[%c2, %c0_20, %c0_21] : memref<9x1x256xf32, #tpu.memory_space<vmem>>, vector<1x1x256xf32>
    %33 = vector.shape_cast %32 : vector<1x1x256xf32> to vector<1x256xf32>
    %34 = vector.broadcast %33 : vector<1x256xf32> to vector<4x256xf32>
    %35 = arith.mulf %31, %34 : vector<4x256xf32>
    %c2_22 = arith.constant 2 : index
    %c0_23 = arith.constant 0 : index
    %c0_24 = arith.constant 0 : index
    %36 = vector.load %arg4[%c2_22, %c0_23, %c0_24] : memref<9x8x4xbf16, #tpu.memory_space<vmem>>, vector<1x8x4xbf16>
    %37 = vector.shape_cast %36 : vector<1x8x4xbf16> to vector<8x4xbf16>
    %38 = arith.truncf %35 : vector<4x256xf32> to vector<4x256xbf16>
    %cst_25 = arith.constant dense<0.000000e+00> : vector<8x256xf32>
    %39 = tpu.matmul %37, %38, %cst_25 {dimension_numbers = #tpu.dot_dimension_numbers<[1], [0], [0], [1], [0, 0, 1, 1], [], []>} : vector<8x4xbf16>, vector<4x256xbf16>, vector<8x256xf32> -> vector<8x256xf32>
    %40 = arith.addf %30, %39 : vector<8x256xf32>
    %41 = vector.extract_strided_slice %9 {offsets = [0, 16], sizes = [4, 256], strides = [1, 1]} : vector<4x290xf32> to vector<4x256xf32>
    %c3 = arith.constant 3 : index
    %c0_26 = arith.constant 0 : index
    %c0_27 = arith.constant 0 : index
    %42 = vector.load %arg5[%c3, %c0_26, %c0_27] : memref<9x1x256xf32, #tpu.memory_space<vmem>>, vector<1x1x256xf32>
    %43 = vector.shape_cast %42 : vector<1x1x256xf32> to vector<1x256xf32>
    %44 = vector.broadcast %43 : vector<1x256xf32> to vector<4x256xf32>
    %45 = arith.mulf %41, %44 : vector<4x256xf32>
    %c3_28 = arith.constant 3 : index
    %c0_29 = arith.constant 0 : index
    %c0_30 = arith.constant 0 : index
    %46 = vector.load %arg4[%c3_28, %c0_29, %c0_30] : memref<9x8x4xbf16, #tpu.memory_space<vmem>>, vector<1x8x4xbf16>
    %47 = vector.shape_cast %46 : vector<1x8x4xbf16> to vector<8x4xbf16>
    %48 = arith.truncf %45 : vector<4x256xf32> to vector<4x256xbf16>
    %cst_31 = arith.constant dense<0.000000e+00> : vector<8x256xf32>
    %49 = tpu.matmul %47, %48, %cst_31 {dimension_numbers = #tpu.dot_dimension_numbers<[1], [0], [0], [1], [0, 0, 1, 1], [], []>} : vector<8x4xbf16>, vector<4x256xbf16>, vector<8x256xf32> -> vector<8x256xf32>
    %50 = arith.addf %40, %49 : vector<8x256xf32>
    %51 = vector.extract_strided_slice %9 {offsets = [0, 17], sizes = [4, 256], strides = [1, 1]} : vector<4x290xf32> to vector<4x256xf32>
    %c4 = arith.constant 4 : index
    %c0_32 = arith.constant 0 : index
    %c0_33 = arith.constant 0 : index
    %52 = vector.load %arg4[%c4, %c0_32, %c0_33] : memref<9x8x4xbf16, #tpu.memory_space<vmem>>, vector<1x8x4xbf16>
    %53 = vector.shape_cast %52 : vector<1x8x4xbf16> to vector<8x4xbf16>
    %54 = arith.truncf %51 : vector<4x256xf32> to vector<4x256xbf16>
    %cst_34 = arith.constant dense<0.000000e+00> : vector<8x256xf32>
    %55 = tpu.matmul %53, %54, %cst_34 {dimension_numbers = #tpu.dot_dimension_numbers<[1], [0], [0], [1], [0, 0, 1, 1], [], []>} : vector<8x4xbf16>, vector<4x256xbf16>, vector<8x256xf32> -> vector<8x256xf32>
    %56 = arith.addf %50, %55 : vector<8x256xf32>
    %57 = vector.extract_strided_slice %9 {offsets = [0, 18], sizes = [4, 256], strides = [1, 1]} : vector<4x290xf32> to vector<4x256xf32>
    %c5 = arith.constant 5 : index
    %c0_35 = arith.constant 0 : index
    %c0_36 = arith.constant 0 : index
    %58 = vector.load %arg5[%c5, %c0_35, %c0_36] : memref<9x1x256xf32, #tpu.memory_space<vmem>>, vector<1x1x256xf32>
    %59 = vector.shape_cast %58 : vector<1x1x256xf32> to vector<1x256xf32>
    %60 = vector.broadcast %59 : vector<1x256xf32> to vector<4x256xf32>
    %61 = arith.mulf %57, %60 : vector<4x256xf32>
    %c5_37 = arith.constant 5 : index
    %c0_38 = arith.constant 0 : index
    %c0_39 = arith.constant 0 : index
    %62 = vector.load %arg4[%c5_37, %c0_38, %c0_39] : memref<9x8x4xbf16, #tpu.memory_space<vmem>>, vector<1x8x4xbf16>
    %63 = vector.shape_cast %62 : vector<1x8x4xbf16> to vector<8x4xbf16>
    %64 = arith.truncf %61 : vector<4x256xf32> to vector<4x256xbf16>
    %cst_40 = arith.constant dense<0.000000e+00> : vector<8x256xf32>
    %65 = tpu.matmul %63, %64, %cst_40 {dimension_numbers = #tpu.dot_dimension_numbers<[1], [0], [0], [1], [0, 0, 1, 1], [], []>} : vector<8x4xbf16>, vector<4x256xbf16>, vector<8x256xf32> -> vector<8x256xf32>
    %66 = arith.addf %56, %65 : vector<8x256xf32>
    %67 = vector.extract_strided_slice %9 {offsets = [0, 32], sizes = [4, 256], strides = [1, 1]} : vector<4x290xf32> to vector<4x256xf32>
    %c6 = arith.constant 6 : index
    %c0_41 = arith.constant 0 : index
    %c0_42 = arith.constant 0 : index
    %68 = vector.load %arg5[%c6, %c0_41, %c0_42] : memref<9x1x256xf32, #tpu.memory_space<vmem>>, vector<1x1x256xf32>
    %69 = vector.shape_cast %68 : vector<1x1x256xf32> to vector<1x256xf32>
    %70 = vector.broadcast %69 : vector<1x256xf32> to vector<4x256xf32>
    %71 = arith.mulf %67, %70 : vector<4x256xf32>
    %c6_43 = arith.constant 6 : index
    %c0_44 = arith.constant 0 : index
    %c0_45 = arith.constant 0 : index
    %72 = vector.load %arg4[%c6_43, %c0_44, %c0_45] : memref<9x8x4xbf16, #tpu.memory_space<vmem>>, vector<1x8x4xbf16>
    %73 = vector.shape_cast %72 : vector<1x8x4xbf16> to vector<8x4xbf16>
    %74 = arith.truncf %71 : vector<4x256xf32> to vector<4x256xbf16>
    %cst_46 = arith.constant dense<0.000000e+00> : vector<8x256xf32>
    %75 = tpu.matmul %73, %74, %cst_46 {dimension_numbers = #tpu.dot_dimension_numbers<[1], [0], [0], [1], [0, 0, 1, 1], [], []>} : vector<8x4xbf16>, vector<4x256xbf16>, vector<8x256xf32> -> vector<8x256xf32>
    %76 = arith.addf %66, %75 : vector<8x256xf32>
    %77 = vector.extract_strided_slice %9 {offsets = [0, 33], sizes = [4, 256], strides = [1, 1]} : vector<4x290xf32> to vector<4x256xf32>
    %c7 = arith.constant 7 : index
    %c0_47 = arith.constant 0 : index
    %c0_48 = arith.constant 0 : index
    %78 = vector.load %arg5[%c7, %c0_47, %c0_48] : memref<9x1x256xf32, #tpu.memory_space<vmem>>, vector<1x1x256xf32>
    %79 = vector.shape_cast %78 : vector<1x1x256xf32> to vector<1x256xf32>
    %80 = vector.broadcast %79 : vector<1x256xf32> to vector<4x256xf32>
    %81 = arith.mulf %77, %80 : vector<4x256xf32>
    %c7_49 = arith.constant 7 : index
    %c0_50 = arith.constant 0 : index
    %c0_51 = arith.constant 0 : index
    %82 = vector.load %arg4[%c7_49, %c0_50, %c0_51] : memref<9x8x4xbf16, #tpu.memory_space<vmem>>, vector<1x8x4xbf16>
    %83 = vector.shape_cast %82 : vector<1x8x4xbf16> to vector<8x4xbf16>
    %84 = arith.truncf %81 : vector<4x256xf32> to vector<4x256xbf16>
    %cst_52 = arith.constant dense<0.000000e+00> : vector<8x256xf32>
    %85 = tpu.matmul %83, %84, %cst_52 {dimension_numbers = #tpu.dot_dimension_numbers<[1], [0], [0], [1], [0, 0, 1, 1], [], []>} : vector<8x4xbf16>, vector<4x256xbf16>, vector<8x256xf32> -> vector<8x256xf32>
    %86 = arith.addf %76, %85 : vector<8x256xf32>
    %87 = vector.extract_strided_slice %9 {offsets = [0, 34], sizes = [4, 256], strides = [1, 1]} : vector<4x290xf32> to vector<4x256xf32>
    %c8 = arith.constant 8 : index
    %c0_53 = arith.constant 0 : index
    %c0_54 = arith.constant 0 : index
    %88 = vector.load %arg5[%c8, %c0_53, %c0_54] : memref<9x1x256xf32, #tpu.memory_space<vmem>>, vector<1x1x256xf32>
    %89 = vector.shape_cast %88 : vector<1x1x256xf32> to vector<1x256xf32>
    %90 = vector.broadcast %89 : vector<1x256xf32> to vector<4x256xf32>
    %91 = arith.mulf %87, %90 : vector<4x256xf32>
    %c8_55 = arith.constant 8 : index
    %c0_56 = arith.constant 0 : index
    %c0_57 = arith.constant 0 : index
    %92 = vector.load %arg4[%c8_55, %c0_56, %c0_57] : memref<9x8x4xbf16, #tpu.memory_space<vmem>>, vector<1x8x4xbf16>
    %93 = vector.shape_cast %92 : vector<1x8x4xbf16> to vector<8x4xbf16>
    %94 = arith.truncf %91 : vector<4x256xf32> to vector<4x256xbf16>
    %cst_58 = arith.constant dense<0.000000e+00> : vector<8x256xf32>
    %95 = tpu.matmul %93, %94, %cst_58 {dimension_numbers = #tpu.dot_dimension_numbers<[1], [0], [0], [1], [0, 0, 1, 1], [], []>} : vector<8x4xbf16>, vector<4x256xbf16>, vector<8x256xf32> -> vector<8x256xf32>
    %96 = arith.addf %86, %95 : vector<8x256xf32>
    %cst_59 = arith.constant 1.000000e-01 : f32
    %97 = vector.broadcast %cst_59 : f32 to vector<8x256xf32>
    %98 = arith.mulf %97, %96 : vector<8x256xf32>
    %99 = arith.maximumf %96, %98 : vector<8x256xf32>
    %c0_60 = arith.constant 0 : index
    %c0_61 = arith.constant 0 : index
    %c0_62 = arith.constant 0 : index
    %100 = vector.load %arg6[%c0_60, %c0_61, %c0_62] : memref<1x8x256xf32, #tpu.memory_space<vmem>>, vector<1x8x256xf32>
    %101 = vector.shape_cast %100 : vector<1x8x256xf32> to vector<8x256xf32>
    %102 = vector.shape_cast %99 : vector<8x256xf32> to vector<1x8x256xf32>
    tpu.vector_store %arg6[%c0_60, %c0_61, %c0_62], %102 {strides = array<i32>} : memref<1x8x256xf32, #tpu.memory_space<vmem>>, vector<1x8x256xf32>,
    return
  }
  func.func @transform_0(%arg0: i32) -> (i32, i32, i32) {
    %c0_i32 = arith.constant 0 : i32
    %c0_i32_0 = arith.constant 0 : i32
    %c0_i32_1 = arith.constant 0 : i32
    return %arg0, %c0_i32, %c0_i32_0 : i32, i32, i32
  }
  func.func @transform_1(%arg0: i32) -> (i32, i32) {
    %c0_i32 = arith.constant 0 : i32
    %c0_i32_0 = arith.constant 0 : i32
    %c0_i32_1 = arith.constant 0 : i32
    return %c0_i32, %c0_i32_0 : i32, i32
  }
  func.func @transform_2(%arg0: i32) -> (i32, i32) {
    %c0_i32 = arith.constant 0 : i32
    %c0_i32_0 = arith.constant 0 : i32
    %c0_i32_1 = arith.constant 0 : i32
    return %c0_i32, %c0_i32_0 : i32, i32
  }
  func.func @transform_3(%arg0: i32) -> (i32, i32, i32) {
    %c0_i32 = arith.constant 0 : i32
    %c0_i32_0 = arith.constant 0 : i32
    %c0_i32_1 = arith.constant 0 : i32
    %c0_i32_2 = arith.constant 0 : i32
    return %c0_i32, %c0_i32_0, %c0_i32_1 : i32, i32, i32
  }
  func.func @transform_4(%arg0: i32) -> (i32, i32, i32) {
    %c0_i32 = arith.constant 0 : i32
    %c0_i32_0 = arith.constant 0 : i32
    %c0_i32_1 = arith.constant 0 : i32
    %c0_i32_2 = arith.constant 0 : i32
    return %c0_i32, %c0_i32_0, %c0_i32_1 : i32, i32, i32
  }
  func.func @transform_5(%arg0: i32) -> (i32, i32, i32) {
    %c0_i32 = arith.constant 0 : i32
    %c0_i32_0 = arith.constant 0 : i32
    %c0_i32_1 = arith.constant 0 : i32
    return %arg0, %c0_i32, %c0_i32_0 : i32, i32, i32
  }
}

</mosaic_0001>

<llo_original>
// kernel: block2d_forward.1
$region0: #{block2d_forward.1}
  #allocation0 [shape = 'u32[]', space=smem, size = 0x4, offset = 0x4, fixed_abs, tag = 'smem constant byte address 0x4 - core index']
  #allocation1 [shape = 'u32[144,128]{1,0:T(1,128)}', space=vmem, size = 0x12000, scoped, tag = 'internal scratch']
  %s0 = inlined_call_operand.vmem [shape: f32[2,4,256], index: 0, kind: input, shape index: {}]
  %s1 = inlined_call_operand.vmem [shape: f32[4,1], index: 1, kind: input, shape index: {}]
  %s2 = inlined_call_operand.vmem [shape: f32[4,1], index: 2, kind: input, shape index: {}]
  %s3 = inlined_call_operand.vmem [shape: bf16[9,8,4], index: 3, kind: input, shape index: {}]
  %s4 = inlined_call_operand.vmem [shape: f32[9,1,256], index: 4, kind: input, shape index: {}]
  %s5 = inlined_call_operand.vmem [shape: f32[2,8,256], index: 5, kind: output, shape index: {}]
  %s6 = sld [smem:[#allocation0]]
  $region53: #{block2d_forward.1} parent=0
    _
  %s8 = ssub.s32 1, %s6
  %s9 = scalar_select 0, %s8, %s6
  loop: start=0, step=1, limit=4
  $region2: #{block2d_forward.1} parent=0 // loop_pre_header
    _
  $region3: #{block2d_forward.1} parent=0 // loop_header
    %s11 = sphi 0, %s15
    %p12 = scmp.ge.s32.totalorder %s11, 4
    %s21 = sphi 0, %s23
    %s24 = sphi 0, %s21
    %s25 = sphi 0, %s24
    %s41 = sphi 0, %s25
    %s45 = sphi 0, %s45
    %s47 = sphi 0, %s45
    %s48 = sphi 0, %s47
    %s62 = sphi 0, %s48
    %s66 = sphi 0, %s66
    %s68 = sphi 0, %s66
    %s69 = sphi 0, %s68
    %s83 = sphi 0, %s69
    %s87 = sphi 0, %s87
    %s89 = sphi 0, %s87
    %s90 = sphi 0, %s89
    %s104 = sphi 0, %s90
    %s108 = sphi 0, %s108
    %s110 = sphi 0, %s108
    %s111 = sphi 0, %s110
    %s125 = sphi 0, %s111
    %s131 = sphi 0, %s133
    %s134 = sphi 0, %s131
    %s135 = sphi 0, %s134
    %s151 = sphi 0, %s135
  $region4: #{block2d_forward.1} parent=0 // loop_header_branch
    %14 = sbr.rel (%p12) target = $region8
  $region5: #{block2d_forward.1} parent=0 // loop_body
    %s16 = ssub.s32 %s11, 1
    %s17 = ssub.s32 %s11, 2
    %s18 = sadd.s32 %s11, 1
    %s19 = ssub.s32 %s11, %s18
    %p20 = scmp.eq.s32.totalorder %s19, 0
    %s22 = sadd.s32 %s21, 1
    %s23 = scalar_select %p20, %s21, %s22
    %p26 = pneg %p20
    %p27 = scmp.eq.s32.totalorder %s11, 1
    %p28 = por %p26, %p27
    %p29 = scmp.ne.s32.totalorder %s21, %s24
    %p30 = scmp.eq.s32.totalorder %s11, 0
    %p31 = por %p29, %p30
    %p32 = scmp.ne.s32.totalorder %s21, %s24
    %p33 = scmp.eq.s32.totalorder %s16, 1
    %p34 = por %p32, %p33
    %p35 = scmp.ne.s32.totalorder %s24, %s25
    %p36 = scmp.eq.s32.totalorder %s16, 0
    %p37 = por %p35, %p36
    %p38 = scmp.ne.s32.totalorder %s24, %s25
    %p39 = scmp.eq.s32.totalorder %s17, 1
    %p40 = por %p38, %p39
    %p42 = scmp.ne.s32.totalorder %s25, %s41
    %p43 = scmp.eq.s32.totalorder %s17, 0
    %p44 = por %p42, %p43
    %s46 = sadd.s32 %s45, 1
    %p49 = scmp.eq.s32.totalorder %s11, 1
    %p50 = scmp.ne.s32.totalorder %s45, %s47
    %p51 = scmp.eq.s32.totalorder %s11, 0
    %p52 = por %p50, %p51
    %p53 = scmp.ne.s32.totalorder %s45, %s47
    %p54 = scmp.eq.s32.totalorder %s16, 1
    %p55 = por %p53, %p54
    %p56 = scmp.ne.s32.totalorder %s47, %s48
    %p57 = scmp.eq.s32.totalorder %s16, 0
    %p58 = por %p56, %p57
    %p59 = scmp.ne.s32.totalorder %s47, %s48
    %p60 = scmp.eq.s32.totalorder %s17, 1
    %p61 = por %p59, %p60
    %p63 = scmp.ne.s32.totalorder %s48, %s62
    %p64 = scmp.eq.s32.totalorder %s17, 0
    %p65 = por %p63, %p64
    %s67 = sadd.s32 %s66, 1
    %p70 = scmp.eq.s32.totalorder %s11, 1
    %p71 = scmp.ne.s32.totalorder %s66, %s68
    %p72 = scmp.eq.s32.totalorder %s11, 0
    %p73 = por %p71, %p72
    %p74 = scmp.ne.s32.totalorder %s66, %s68
    %p75 = scmp.eq.s32.totalorder %s16, 1
    %p76 = por %p74, %p75
    %p77 = scmp.ne.s32.totalorder %s68, %s69
    %p78 = scmp.eq.s32.totalorder %s16, 0
    %p79 = por %p77, %p78
    %p80 = scmp.ne.s32.totalorder %s68, %s69
    %p81 = scmp.eq.s32.totalorder %s17, 1
    %p82 = por %p80, %p81
    %p84 = scmp.ne.s32.totalorder %s69, %s83
    %p85 = scmp.eq.s32.totalorder %s17, 0
    %p86 = por %p84, %p85
    %s88 = sadd.s32 %s87, 1
    %p91 = scmp.eq.s32.totalorder %s11, 1
    %p92 = scmp.ne.s32.totalorder %s87, %s89
    %p93 = scmp.eq.s32.totalorder %s11, 0
    %p94 = por %p92, %p93
    %p95 = scmp.ne.s32.totalorder %s87, %s89
    %p96 = scmp.eq.s32.totalorder %s16, 1
    %p97 = por %p95, %p96
    %p98 = scmp.ne.s32.totalorder %s89, %s90
    %p99 = scmp.eq.s32.totalorder %s16, 0
    %p100 = por %p98, %p99
    %p101 = scmp.ne.s32.totalorder %s89, %s90
    %p102 = scmp.eq.s32.totalorder %s17, 1
    %p103 = por %p101, %p102
    %p105 = scmp.ne.s32.totalorder %s90, %s104
    %p106 = scmp.eq.s32.totalorder %s17, 0
    %p107 = por %p105, %p106
    %s109 = sadd.s32 %s108, 1
    %p112 = scmp.eq.s32.totalorder %s11, 1
    %p113 = scmp.ne.s32.totalorder %s108, %s110
    %p114 = scmp.eq.s32.totalorder %s11, 0
    %p115 = por %p113, %p114
    %p116 = scmp.ne.s32.totalorder %s108, %s110
    %p117 = scmp.eq.s32.totalorder %s16, 1
    %p118 = por %p116, %p117
    %p119 = scmp.ne.s32.totalorder %s110, %s111
    %p120 = scmp.eq.s32.totalorder %s16, 0
    %p121 = por %p119, %p120
    %p122 = scmp.ne.s32.totalorder %s110, %s111
    %p123 = scmp.eq.s32.totalorder %s17, 1
    %p124 = por %p122, %p123
    %p126 = scmp.ne.s32.totalorder %s111, %s125
    %p127 = scmp.eq.s32.totalorder %s17, 0
    %p128 = por %p126, %p127
    %s129 = ssub.s32 %s11, %s18
    %p130 = scmp.eq.s32.totalorder %s129, 0
    %s132 = sadd.s32 %s131, 1
    %s133 = scalar_select %p130, %s131, %s132
    %p136 = pneg %p130
    %p137 = scmp.eq.s32.totalorder %s11, 1
    %p138 = por %p136, %p137
    %p139 = scmp.ne.s32.totalorder %s131, %s134
    %p140 = scmp.eq.s32.totalorder %s11, 0
    %p141 = por %p139, %p140
    %p142 = scmp.ne.s32.totalorder %s131, %s134
    %p143 = scmp.eq.s32.totalorder %s16, 1
    %p144 = por %p142, %p143
    %p145 = scmp.ne.s32.totalorder %s134, %s135
    %p146 = scmp.eq.s32.totalorder %s16, 0
    %p147 = por %p145, %p146
    %p148 = scmp.ne.s32.totalorder %s134, %s135
    %p149 = scmp.eq.s32.totalorder %s17, 1
    %p150 = por %p148, %p149
    %p152 = scmp.ne.s32.totalorder %s135, %s151
    %p153 = scmp.eq.s32.totalorder %s17, 0
    %p154 = por %p152, %p153
    %p155 = scmp.le.s32.totalorder 1, %s11
    %p156 = scmp.lt.s32.totalorder %s11, 3
    %p157 = pnand %p155, %p156
    %p158 = pneg %p157
    // Predicated region
    $region9: #{block2d_forward.1} parent=5 // pred_check
      _
    $region10: #{block2d_forward.1} parent=5 // pred_check_branch
      %160 = sbr.rel (%p157) target = $region12
    $region11: #{block2d_forward.1} parent=5 // pred_region
      %s161 = ssub.s32 %s11, 1
      // Predicated region
      $region13: #{block2d_forward.1} parent=11 // pred_check
        %p162 = pneg %p58
      $region14: #{block2d_forward.1} parent=11 // pred_check_branch
        %164 = sbr.rel (%p162) target = $region16
      $region15: #{block2d_forward.1} parent=11 // pred_region
        _
      $region16: #{block2d_forward.1} parent=11 // pred_fallthru
        _
      // Predicated region
      $region17: #{block2d_forward.1} parent=11 // pred_check
        %p165 = pneg %p79
      $region18: #{block2d_forward.1} parent=11 // pred_check_branch
        %167 = sbr.rel (%p165) target = $region20
      $region19: #{block2d_forward.1} parent=11 // pred_region
        _
      $region20: #{block2d_forward.1} parent=11 // pred_fallthru
        _
      // Predicated region
      $region21: #{block2d_forward.1} parent=11 // pred_check
        %p168 = pneg %p100
      $region22: #{block2d_forward.1} parent=11 // pred_check_branch
        %170 = sbr.rel (%p168) target = $region24
      $region23: #{block2d_forward.1} parent=11 // pred_region
        _
      $region24: #{block2d_forward.1} parent=11 // pred_fallthru
        _
      // Predicated region
      $region25: #{block2d_forward.1} parent=11 // pred_check
        %p171 = pneg %p121
      $region26: #{block2d_forward.1} parent=11 // pred_check_branch
        %173 = sbr.rel (%p171) target = $region28
      $region27: #{block2d_forward.1} parent=11 // pred_region
        _
      $region28: #{block2d_forward.1} parent=11 // pred_fallthru
        _
    $region12: #{block2d_forward.1} parent=5 // pred_fallthru
      _
    %p174 = scmp.lt.s32.totalorder %s11, 2
    // Predicated region
    $region29: #{block2d_forward.1} parent=5 // pred_check
      %p175 = pneg %p174
    $region30: #{block2d_forward.1} parent=5 // pred_check_branch
      %177 = sbr.rel (%p175) target = $region32
    $region31: #{block2d_forward.1} parent=5 // pred_region
      // Predicated region
      $region33: #{block2d_forward.1} parent=31 // pred_check
        %p178 = pneg %p31
      $region34: #{block2d_forward.1} parent=31 // pred_check_branch
        %180 = sbr.rel (%p178) target = $region36
      $region35: #{block2d_forward.1} parent=31 // pred_region
        %p181 = scmp.lt.s32.totalorder %s11, 1
        %s182 = scalar_select %p181, %s11, 1
        %s183 = smul.addr %s182, 2
        %s184 = smul.addr %s183, 4
        %s185 = scalar_lea.vmem %s0, %s184
      $region36: #{block2d_forward.1} parent=31 // pred_fallthru
        _
    $region32: #{block2d_forward.1} parent=5 // pred_fallthru
      _
    %p186 = scmp.le.s32.totalorder 1, %s11
    %p187 = scmp.lt.s32.totalorder %s11, 3
    %p188 = pnand %p186, %p187
    %p189 = pneg %p188
    // Predicated region
    $region37: #{block2d_forward.1} parent=5 // pred_check
      _
    $region38: #{block2d_forward.1} parent=5 // pred_check_branch
      %191 = sbr.rel (%p188) target = $region40
    $region39: #{block2d_forward.1} parent=5 // pred_region
      %s192 = ssub.s32 %s11, 1
      %p193 = scmp.lt.s32.totalorder %s16, 1
      %s194 = scalar_select %p193, %s16, 1
      %s195 = smul.addr %s194, 2
      %s196 = smul.addr %s195, 4
      %s197 = scalar_lea.vmem %s0, %s196
      %p198 = pneg %p37
      %p199 = pneg %p34
      %p200 = pneg %p58
      %p201 = pneg %p55
      %p202 = pneg %p79
      %p203 = pneg %p76
      %p204 = pneg %p100
      %p205 = pneg %p97
      %p206 = pneg %p121
      %p207 = pneg %p118
      %p208 = pneg %p147
      %p209 = pneg %p144
      %p210 = scmp.lt.s32.totalorder %s16, 1
      %s211 = scalar_select %p210, %s16, 1
      %s212 = smul.addr %s211, 2
      %s213 = smul.addr %s212, 8
      %s214 = scalar_lea.vmem %s5, %s213
      %p215 = scmp.lt.s32.totalorder %s16, 1
      %s216 = scalar_select %p215, %s16, 1
      %s217 = smul.addr %s216, 2
      %s218 = smul.addr %s217, 4
      %s219 = scalar_lea.vmem %s0, %s218
      %p220 = scmp.lt.s32.totalorder %s16, 1
      %s221 = scalar_select %p220, %s16, 1
      %s222 = smul.addr %s221, 2
      %s223 = smul.addr %s222, 8
      %s224 = scalar_lea.vmem %s5, %s223
      %v226 = vld [vmem:[%s219] sm:$0xff]
      %v227 = vld [vmem:[%s1] sm:$0xf]
      %229 = vset.pattern.permute.xlu0 0
      %230 = vperm.xlu0 %229, %v227
      %v231 = vpop.permute.xlu0 %230
      %v233 = vunpack.c.l.s4 839922192
      %v234 = vunpack.c.0.s8 %v233
      %v235 = vlaneseq
      %v236 = vshrl.u32 %v235, 7
      %v237 = vsub.s32 %v234, %v236
      %v238 = vrot.slane %v231, %v237
      %v240 = vmul.f32 %v226, %v238
      %v241 = vld [vmem:[%s2] sm:$0xf]
      %243 = vset.pattern.permute.xlu0 0
      %244 = vperm.xlu0 %243, %v241
      %v245 = vpop.permute.xlu0 %244
      %v247 = vunpack.c.l.s4 839922192
      %v248 = vunpack.c.0.s8 %v247
      %v249 = vlaneseq
      %v250 = vshrl.u32 %v249, 7
      %v251 = vsub.s32 %v248, %v250
      %v252 = vrot.slane %v245, %v251
      %v254 = vadd.f32 %v240, %v252
      %v256 = vcombine.high %v254, %v254
      %257 = vrot.lane.b32.xlu0 %v254, 17
      %v258 = vpop.permute.xlu0 %257
      %259 = vrot.lane.b32.xlu0 %v256, 17
      %v260 = vpop.permute.xlu0 %259
      %vm261 = vcmask 138240
      %v262 = vsel %vm261, %v258, %v260
      %v266 = vsel %vm261, 0.0, %v258
      %v267 = vsel %vm261, %v260, 0.0
      %v268 = vld [vmem:[%s4] sm:$0x3]
      %v270 = vlaneseq
      %v271 = vshrl.u32 %v270, 7
      %v272 = vsub.s32 0, %v271
      %v273 = vrot.slane %v268, %v272
      %v274 = vlaneseq
      %v275 = vshrl.u32 %v274, 7
      %v276 = vsub.s32 1, %v275
      %v277 = vrot.slane %v268, %v276
      %v280 = vmul.f32 %v266, %v273
      %v281 = vmul.f32 %v262, %v277
      %v282 = vld [vmem:[%s3] sm:$0xf]
      %v283 = vpack.c.bf16 %v280, %v280
      %v284 = vpack.c.bf16 %v281, %v281
      %s285 = scalar_lea.vmem %s4, 2
      %v286 = vld [vmem:[%s285] sm:$0x3]
      %v288 = vlaneseq
      %v289 = vshrl.u32 %v288, 7
      %v290 = vsub.s32 0, %v289
      %v291 = vrot.slane %v286, %v290
      %v292 = vlaneseq
      %v293 = vshrl.u32 %v292, 7
      %v294 = vsub.s32 1, %v293
      %v295 = vrot.slane %v286, %v294
      %296 = vrot.lane.b32.xlu0 %v291, 1
      %v297 = vpop.permute.xlu0 %296
      %298 = vrot.lane.b32.xlu0 %v295, 1
      %v299 = vpop.permute.xlu0 %298
      %vm300 = vcmask 7168
      %v301 = vsel %vm300, %v297, %v299
      %v305 = vmul.f32 %v266, %v297
      %v306 = vmul.f32 %v262, %v301
      %v307 = vmul.f32 %v267, %v299
      %s308 = scalar_lea.vmem %s3, 4
      %v309 = vld [vmem:[%s308] sm:$0xf]
      %v310 = vpack.c.bf16 %v305, %v305
      %v311 = vpack.c.bf16 %v306, %v306
      %v312 = vpack.c.bf16 %v307, %v307
      %316 = vrot.lane.b32.xlu0 %v310, 127
      %v317 = vpop.permute.xlu0 %316
      %318 = vrot.lane.b32.xlu0 %v311, 127
      %v319 = vpop.permute.xlu0 %318
      %320 = vrot.lane.b32.xlu0 %v312, 127
      %v321 = vpop.permute.xlu0 %320
      %vm322 = vcmask 1039360
      %v323 = vsel %vm322, %v317, %v319
      %v324 = vsel %vm322, %v319, %v321
      %vm325 = vcmask 31744
      %v327 = vsel %vm325, %v309, 0
      %vm329 = vcmask 1041408
      %v331 = vsel %vm329, %v323, 0
      %v334 = vsel %vm329, %v324, 0
      %336 = vmatprep.subr.bf16.mxu0 %v334
      %337 = vmatpush1.bf16.msra.mxu0 %v331
      %338 = vmatprep.subr.bf16.mxu0 0
      %339 = vmatpush1.bf16.msra.mxu0 0
      %340 = vmatprep.subr.bf16.mxu0 0
      %341 = vmatpush1.bf16.msra.mxu0 0
      %342 = vmatprep.subr.bf16.mxu0 0
      %343 = vmatpush1.bf16.msra.mxu0 0
      %344 = vmatprep.subr.bf16.mxu0 0
      %345 = vmatpush1.bf16.msra.mxu0 0
      %346 = vmatprep.subr.bf16.mxu0 0
      %347 = vmatpush1.bf16.msra.mxu0 0
      %348 = vmatprep.subr.bf16.mxu0 0
      %349 = vmatpush1.bf16.msra.mxu0 0
      %350 = vmatprep.subr.bf16.mxu0 0
      %351 = vmatpush1.bf16.msra.mxu0 0
      %352 = vmatprep.subr.bf16.mxu0 0
      %353 = vmatpush1.bf16.msra.mxu0 0
      %354 = vmatprep.subr.bf16.mxu0 0
      %355 = vmatpush1.bf16.msra.mxu0 0
      %356 = vmatprep.subr.bf16.mxu0 0
      %357 = vmatpush1.bf16.msra.mxu0 0
      %358 = vmatprep.subr.bf16.mxu0 0
      %359 = vmatpush1.bf16.msra.mxu0 0
      %360 = vmatprep.subr.bf16.mxu0 0
      %361 = vmatpush1.bf16.msra.mxu0 0
      %362 = vmatprep.subr.bf16.mxu0 0
      %363 = vmatpush1.bf16.msra.mxu0 0
      %364 = vmatprep.subr.bf16.mxu0 0
      %365 = vmatpush1.bf16.msra.mxu0 0
      %366 = vmatprep.subr.bf16.mxu0 0
      %367 = vmatpush1.bf16.msra.mxu0 0
      %368 = vmatprep.mubr.bf16.mxu0 0
      %369 = vmatmul.mubr.bf16.gmra.mrb[0].mxu0 %v327
      %v370 = vpop.f32.mrb[0].mxu0
      %v371 = vadd.f32 0.0, %v370
      %v372 = vpop.f32.mrb[0].mxu0
      %v373 = vadd.f32 0.0, %v372
      %v374 = vpop.f32.mrb[0].mxu0
      %v375 = vpop.f32.mrb[0].mxu0
      %376 = vdwg.mxu0
      %v378 = vsel %vm325, %v282, 0
      %v381 = vsel %vm329, %v283, 0
      %v384 = vsel %vm329, %v284, 0
      %386 = vmatprep.subr.bf16.mxu0 %v384
      %387 = vmatpush1.bf16.msra.mxu0 %v381
      %388 = vmatprep.subr.bf16.mxu0 0
      %389 = vmatpush1.bf16.msra.mxu0 0
      %390 = vmatprep.subr.bf16.mxu0 0
      %391 = vmatpush1.bf16.msra.mxu0 0
      %392 = vmatprep.subr.bf16.mxu0 0
      %393 = vmatpush1.bf16.msra.mxu0 0
      %394 = vmatprep.subr.bf16.mxu0 0
      %395 = vmatpush1.bf16.msra.mxu0 0
      %396 = vmatprep.subr.bf16.mxu0 0
      %397 = vmatpush1.bf16.msra.mxu0 0
      %398 = vmatprep.subr.bf16.mxu0 0
      %399 = vmatpush1.bf16.msra.mxu0 0
      %400 = vmatprep.subr.bf16.mxu0 0
      %401 = vmatpush1.bf16.msra.mxu0 0
      %402 = vmatprep.subr.bf16.mxu0 0
      %403 = vmatpush1.bf16.msra.mxu0 0
      %404 = vmatprep.subr.bf16.mxu0 0
      %405 = vmatpush1.bf16.msra.mxu0 0
      %406 = vmatprep.subr.bf16.mxu0 0
      %407 = vmatpush1.bf16.msra.mxu0 0
      %408 = vmatprep.subr.bf16.mxu0 0
      %409 = vmatpush1.bf16.msra.mxu0 0
      %410 = vmatprep.subr.bf16.mxu0 0
      %411 = vmatpush1.bf16.msra.mxu0 0
      %412 = vmatprep.subr.bf16.mxu0 0
      %413 = vmatpush1.bf16.msra.mxu0 0
      %414 = vmatprep.subr.bf16.mxu0 0
      %415 = vmatpush1.bf16.msra.mxu0 0
      %416 = vmatprep.subr.bf16.mxu0 0
      %417 = vmatpush1.bf16.msra.mxu0 0
      %418 = vmatprep.mubr.bf16.mxu0 0
      %419 = vmatmul.mubr.bf16.gmra.mrb[0].mxu0 %v378
      %v420 = vpop.f32.mrb[0].mxu0
      %v421 = vadd.f32 %v371, %v420
      %v422 = vpop.f32.mrb[0].mxu0
      %v423 = vadd.f32 %v373, %v422
      %v424 = vpop.f32.mrb[0].mxu0
      %v425 = vpop.f32.mrb[0].mxu0
      %426 = vdwg.mxu0
      %s427 = scalar_lea.vmem %s4, 4
      %v428 = vld [vmem:[%s427] sm:$0x3]
      %v430 = vlaneseq
      %v431 = vshrl.u32 %v430, 7
      %v432 = vsub.s32 0, %v431
      %v433 = vrot.slane %v428, %v432
      %v434 = vlaneseq
      %v435 = vshrl.u32 %v434, 7
      %v436 = vsub.s32 1, %v435
      %v437 = vrot.slane %v428, %v436
      %438 = vrot.lane.b32.xlu0 %v433, 2
      %v439 = vpop.permute.xlu0 %438
      %440 = vrot.lane.b32.xlu0 %v437, 2
      %v441 = vpop.permute.xlu0 %440
      %vm442 = vcmask 15360
      %v443 = vsel %vm442, %v439, %v441
      %v447 = vmul.f32 %v266, %v439
      %v448 = vmul.f32 %v262, %v443
      %v449 = vmul.f32 %v267, %v441
      %s450 = scalar_lea.vmem %s3, 8
      %v451 = vld [vmem:[%s450] sm:$0xf]
      %v452 = vpack.c.bf16 %v447, %v447
      %v453 = vpack.c.bf16 %v448, %v448
      %v454 = vpack.c.bf16 %v449, %v449
      %458 = vrot.lane.b32.xlu0 %v452, 126
      %v459 = vpop.permute.xlu0 %458
      %460 = vrot.lane.b32.xlu0 %v453, 126
      %v461 = vpop.permute.xlu0 %460
      %462 = vrot.lane.b32.xlu0 %v454, 126
      %v463 = vpop.permute.xlu0 %462
      %vm464 = vcmask 1031168
      %v465 = vsel %vm464, %v459, %v461
      %v466 = vsel %vm464, %v461, %v463
      %v468 = vsel %vm325, %v451, 0
      %v471 = vsel %vm329, %v465, 0
      %v474 = vsel %vm329, %v466, 0
      %476 = vmatprep.subr.bf16.mxu0 %v474
      %477 = vmatpush1.bf16.msra.mxu0 %v471
      %478 = vmatprep.subr.bf16.mxu0 0
      %479 = vmatpush1.bf16.msra.mxu0 0
      %480 = vmatprep.subr.bf16.mxu0 0
      %481 = vmatpush1.bf16.msra.mxu0 0
      %482 = vmatprep.subr.bf16.mxu0 0
      %483 = vmatpush1.bf16.msra.mxu0 0
      %484 = vmatprep.subr.bf16.mxu0 0
      %485 = vmatpush1.bf16.msra.mxu0 0
      %486 = vmatprep.subr.bf16.mxu0 0
      %487 = vmatpush1.bf16.msra.mxu0 0
      %488 = vmatprep.subr.bf16.mxu0 0
      %489 = vmatpush1.bf16.msra.mxu0 0
      %490 = vmatprep.subr.bf16.mxu0 0
      %491 = vmatpush1.bf16.msra.mxu0 0
      %492 = vmatprep.subr.bf16.mxu0 0
      %493 = vmatpush1.bf16.msra.mxu0 0
      %494 = vmatprep.subr.bf16.mxu0 0
      %495 = vmatpush1.bf16.msra.mxu0 0
      %496 = vmatprep.subr.bf16.mxu0 0
      %497 = vmatpush1.bf16.msra.mxu0 0
      %498 = vmatprep.subr.bf16.mxu0 0
      %499 = vmatpush1.bf16.msra.mxu0 0
      %500 = vmatprep.subr.bf16.mxu0 0
      %501 = vmatpush1.bf16.msra.mxu0 0
      %502 = vmatprep.subr.bf16.mxu0 0
      %503 = vmatpush1.bf16.msra.mxu0 0
      %504 = vmatprep.subr.bf16.mxu0 0
      %505 = vmatpush1.bf16.msra.mxu0 0
      %506 = vmatprep.subr.bf16.mxu0 0
      %507 = vmatpush1.bf16.msra.mxu0 0
      %508 = vmatprep.mubr.bf16.mxu0 0
      %509 = vmatmul.mubr.bf16.gmra.mrb[0].mxu0 %v468
      %v510 = vpop.f32.mrb[0].mxu0
      %v511 = vadd.f32 0.0, %v510
      %v512 = vpop.f32.mrb[0].mxu0
      %v513 = vadd.f32 0.0, %v512
      %v514 = vpop.f32.mrb[0].mxu0
      %v515 = vpop.f32.mrb[0].mxu0
      %516 = vdwg.mxu0
      %v517 = vadd.f32 %v421, %v511
      %v518 = vadd.f32 %v423, %v513
      %s519 = scalar_lea.vmem %s4, 6
      %v520 = vld [vmem:[%s519] sm:$0x3]
      %v522 = vlaneseq
      %v523 = vshrl.u32 %v522, 7
      %v524 = vsub.s32 0, %v523
      %v525 = vrot.slane %v520, %v524
      %v526 = vlaneseq
      %v527 = vshrl.u32 %v526, 7
      %v528 = vsub.s32 1, %v527
      %v529 = vrot.slane %v520, %v528
      %530 = vrot.lane.b32.xlu0 %v525, 16
      %v531 = vpop.permute.xlu0 %530
      %532 = vrot.lane.b32.xlu0 %v529, 16
      %v533 = vpop.permute.xlu0 %532
      %vm534 = vcmask 130048
      %v535 = vsel %vm534, %v531, %v533
      %v539 = vmul.f32 %v266, %v531
      %v540 = vmul.f32 %v262, %v535
      %v541 = vmul.f32 %v267, %v533
      %s542 = scalar_lea.vmem %s3, 12
      %v543 = vld [vmem:[%s542] sm:$0xf]
      %v544 = vpack.c.bf16 %v539, %v539
      %v545 = vpack.c.bf16 %v540, %v540
      %v546 = vpack.c.bf16 %v541, %v541
      %550 = vrot.lane.b32.xlu0 %v544, 112
      %v551 = vpop.permute.xlu0 %550
      %552 = vrot.lane.b32.xlu0 %v545, 112
      %v553 = vpop.permute.xlu0 %552
      %554 = vrot.lane.b32.xlu0 %v546, 112
      %v555 = vpop.permute.xlu0 %554
      %vm556 = vcmask 916480
      %v557 = vsel %vm556, %v551, %v553
      %v558 = vsel %vm556, %v553, %v555
      %v560 = vsel %vm325, %v543, 0
      %v563 = vsel %vm329, %v557, 0
      %v566 = vsel %vm329, %v558, 0
      %568 = vmatprep.subr.bf16.mxu0 %v566
      %569 = vmatpush1.bf16.msra.mxu0 %v563
      %570 = vmatprep.subr.bf16.mxu0 0
      %571 = vmatpush1.bf16.msra.mxu0 0
      %572 = vmatprep.subr.bf16.mxu0 0
      %573 = vmatpush1.bf16.msra.mxu0 0
      %574 = vmatprep.subr.bf16.mxu0 0
      %575 = vmatpush1.bf16.msra.mxu0 0
      %576 = vmatprep.subr.bf16.mxu0 0
      %577 = vmatpush1.bf16.msra.mxu0 0
      %578 = vmatprep.subr.bf16.mxu0 0
      %579 = vmatpush1.bf16.msra.mxu0 0
      %580 = vmatprep.subr.bf16.mxu0 0
      %581 = vmatpush1.bf16.msra.mxu0 0
      %582 = vmatprep.subr.bf16.mxu0 0
      %583 = vmatpush1.bf16.msra.mxu0 0
      %584 = vmatprep.subr.bf16.mxu0 0
      %585 = vmatpush1.bf16.msra.mxu0 0
      %586 = vmatprep.subr.bf16.mxu0 0
      %587 = vmatpush1.bf16.msra.mxu0 0
      %588 = vmatprep.subr.bf16.mxu0 0
      %589 = vmatpush1.bf16.msra.mxu0 0
      %590 = vmatprep.subr.bf16.mxu0 0
      %591 = vmatpush1.bf16.msra.mxu0 0
      %592 = vmatprep.subr.bf16.mxu0 0
      %593 = vmatpush1.bf16.msra.mxu0 0
      %594 = vmatprep.subr.bf16.mxu0 0
      %595 = vmatpush1.bf16.msra.mxu0 0
      %596 = vmatprep.subr.bf16.mxu0 0
      %597 = vmatpush1.bf16.msra.mxu0 0
      %598 = vmatprep.subr.bf16.mxu0 0
      %599 = vmatpush1.bf16.msra.mxu0 0
      %600 = vmatprep.mubr.bf16.mxu0 0
      %601 = vmatmul.mubr.bf16.gmra.mrb[0].mxu0 %v560
      %v602 = vpop.f32.mrb[0].mxu0
      %v603 = vadd.f32 0.0, %v602
      %v604 = vpop.f32.mrb[0].mxu0
      %v605 = vadd.f32 0.0, %v604
      %v606 = vpop.f32.mrb[0].mxu0
      %v607 = vpop.f32.mrb[0].mxu0
      %608 = vdwg.mxu0
      %v609 = vadd.f32 %v517, %v603
      %v610 = vadd.f32 %v518, %v605
      %s611 = scalar_lea.vmem %s3, 16
      %v612 = vld [vmem:[%s611] sm:$0xf]
      %v613 = vpack.c.bf16 %v266, %v266
      %v614 = vpack.c.bf16 %v262, %v262
      %v615 = vpack.c.bf16 %v267, %v267
      %619 = vrot.lane.b32.xlu0 %v613, 111
      %v620 = vpop.permute.xlu0 %619
      %621 = vrot.lane.b32.xlu0 %v614, 111
      %v622 = vpop.permute.xlu0 %621
      %623 = vrot.lane.b32.xlu0 %v615, 111
      %v624 = vpop.permute.xlu0 %623
      %vm625 = vcmask 908288
      %v626 = vsel %vm625, %v620, %v622
      %v627 = vsel %vm625, %v622, %v624
      %v629 = vsel %vm325, %v612, 0
      %v632 = vsel %vm329, %v626, 0
      %v635 = vsel %vm329, %v627, 0
      %637 = vmatprep.subr.bf16.mxu0 %v635
      %638 = vmatpush1.bf16.msra.mxu0 %v632
      %639 = vmatprep.subr.bf16.mxu0 0
      %640 = vmatpush1.bf16.msra.mxu0 0
      %641 = vmatprep.subr.bf16.mxu0 0
      %642 = vmatpush1.bf16.msra.mxu0 0
      %643 = vmatprep.subr.bf16.mxu0 0
      %644 = vmatpush1.bf16.msra.mxu0 0
      %645 = vmatprep.subr.bf16.mxu0 0
      %646 = vmatpush1.bf16.msra.mxu0 0
      %647 = vmatprep.subr.bf16.mxu0 0
      %648 = vmatpush1.bf16.msra.mxu0 0
      %649 = vmatprep.subr.bf16.mxu0 0
      %650 = vmatpush1.bf16.msra.mxu0 0
      %651 = vmatprep.subr.bf16.mxu0 0
      %652 = vmatpush1.bf16.msra.mxu0 0
      %653 = vmatprep.subr.bf16.mxu0 0
      %654 = vmatpush1.bf16.msra.mxu0 0
      %655 = vmatprep.subr.bf16.mxu0 0
      %656 = vmatpush1.bf16.msra.mxu0 0
      %657 = vmatprep.subr.bf16.mxu0 0
      %658 = vmatpush1.bf16.msra.mxu0 0
      %659 = vmatprep.subr.bf16.mxu0 0
      %660 = vmatpush1.bf16.msra.mxu0 0
      %661 = vmatprep.subr.bf16.mxu0 0
      %662 = vmatpush1.bf16.msra.mxu0 0
      %663 = vmatprep.subr.bf16.mxu0 0
      %664 = vmatpush1.bf16.msra.mxu0 0
      %665 = vmatprep.subr.bf16.mxu0 0
      %666 = vmatpush1.bf16.msra.mxu0 0
      %667 = vmatprep.subr.bf16.mxu0 0
      %668 = vmatpush1.bf16.msra.mxu0 0
      %669 = vmatprep.mubr.bf16.mxu0 0
      %670 = vmatmul.mubr.bf16.gmra.mrb[0].mxu0 %v629
      %v671 = vpop.f32.mrb[0].mxu0
      %v672 = vadd.f32 0.0, %v671
      %v673 = vpop.f32.mrb[0].mxu0
      %v674 = vadd.f32 0.0, %v673
      %v675 = vpop.f32.mrb[0].mxu0
      %v676 = vpop.f32.mrb[0].mxu0
      %677 = vdwg.mxu0
      %v678 = vadd.f32 %v609, %v672
      %v679 = vadd.f32 %v610, %v674
      %s680 = scalar_lea.vmem %s4, 10
      %v681 = vld [vmem:[%s680] sm:$0x3]
      %v683 = vlaneseq
      %v684 = vshrl.u32 %v683, 7
      %v685 = vsub.s32 0, %v684
      %v686 = vrot.slane %v681, %v685
      %v687 = vlaneseq
      %v688 = vshrl.u32 %v687, 7
      %v689 = vsub.s32 1, %v688
      %v690 = vrot.slane %v681, %v689
      %691 = vrot.lane.b32.xlu0 %v686, 18
      %v692 = vpop.permute.xlu0 %691
      %693 = vrot.lane.b32.xlu0 %v690, 18
      %v694 = vpop.permute.xlu0 %693
      %vm695 = vcmask 146432
      %v696 = vsel %vm695, %v692, %v694
      %v700 = vmul.f32 %v266, %v692
      %v701 = vmul.f32 %v262, %v696
      %v702 = vmul.f32 %v267, %v694
      %s703 = scalar_lea.vmem %s3, 20
      %v704 = vld [vmem:[%s703] sm:$0xf]
      %v705 = vpack.c.bf16 %v700, %v700
      %v706 = vpack.c.bf16 %v701, %v701
      %v707 = vpack.c.bf16 %v702, %v702
      %711 = vrot.lane.b32.xlu0 %v705, 110
      %v712 = vpop.permute.xlu0 %711
      %713 = vrot.lane.b32.xlu0 %v706, 110
      %v714 = vpop.permute.xlu0 %713
      %715 = vrot.lane.b32.xlu0 %v707, 110
      %v716 = vpop.permute.xlu0 %715
      %vm717 = vcmask 900096
      %v718 = vsel %vm717, %v712, %v714
      %v719 = vsel %vm717, %v714, %v716
      %v721 = vsel %vm325, %v704, 0
      %v724 = vsel %vm329, %v718, 0
      %v727 = vsel %vm329, %v719, 0
      %729 = vmatprep.subr.bf16.mxu0 %v727
      %730 = vmatpush1.bf16.msra.mxu0 %v724
      %731 = vmatprep.subr.bf16.mxu0 0
      %732 = vmatpush1.bf16.msra.mxu0 0
      %733 = vmatprep.subr.bf16.mxu0 0
      %734 = vmatpush1.bf16.msra.mxu0 0
      %735 = vmatprep.subr.bf16.mxu0 0
      %736 = vmatpush1.bf16.msra.mxu0 0
      %737 = vmatprep.subr.bf16.mxu0 0
      %738 = vmatpush1.bf16.msra.mxu0 0
      %739 = vmatprep.subr.bf16.mxu0 0
      %740 = vmatpush1.bf16.msra.mxu0 0
      %741 = vmatprep.subr.bf16.mxu0 0
      %742 = vmatpush1.bf16.msra.mxu0 0
      %743 = vmatprep.subr.bf16.mxu0 0
      %744 = vmatpush1.bf16.msra.mxu0 0
      %745 = vmatprep.subr.bf16.mxu0 0
      %746 = vmatpush1.bf16.msra.mxu0 0
      %747 = vmatprep.subr.bf16.mxu0 0
      %748 = vmatpush1.bf16.msra.mxu0 0
      %749 = vmatprep.subr.bf16.mxu0 0
      %750 = vmatpush1.bf16.msra.mxu0 0
      %751 = vmatprep.subr.bf16.mxu0 0
      %752 = vmatpush1.bf16.msra.mxu0 0
      %753 = vmatprep.subr.bf16.mxu0 0
      %754 = vmatpush1.bf16.msra.mxu0 0
      %755 = vmatprep.subr.bf16.mxu0 0
      %756 = vmatpush1.bf16.msra.mxu0 0
      %757 = vmatprep.subr.bf16.mxu0 0
      %758 = vmatpush1.bf16.msra.mxu0 0
      %759 = vmatprep.subr.bf16.mxu0 0
      %760 = vmatpush1.bf16.msra.mxu0 0
      %761 = vmatprep.mubr.bf16.mxu0 0
      %762 = vmatmul.mubr.bf16.gmra.mrb[0].mxu0 %v721
      %v763 = vpop.f32.mrb[0].mxu0
      %v764 = vadd.f32 0.0, %v763
      %v765 = vpop.f32.mrb[0].mxu0
      %v766 = vadd.f32 0.0, %v765
      %v767 = vpop.f32.mrb[0].mxu0
      %v768 = vpop.f32.mrb[0].mxu0
      %769 = vdwg.mxu0
      %v770 = vadd.f32 %v678, %v764
      %v771 = vadd.f32 %v679, %v766
      %s772 = scalar_lea.vmem %s4, 12
      %v773 = vld [vmem:[%s772] sm:$0x3]
      %v775 = vlaneseq
      %v776 = vshrl.u32 %v775, 7
      %v777 = vsub.s32 0, %v776
      %v778 = vrot.slane %v773, %v777
      %v779 = vlaneseq
      %v780 = vshrl.u32 %v779, 7
      %v781 = vsub.s32 1, %v780
      %v782 = vrot.slane %v773, %v781
      %783 = vrot.lane.b32.xlu0 %v778, 32
      %v784 = vpop.permute.xlu0 %783
      %785 = vrot.lane.b32.xlu0 %v782, 32
      %v786 = vpop.permute.xlu0 %785
      %vm787 = vcmask 261120
      %v788 = vsel %vm787, %v784, %v786
      %v792 = vmul.f32 %v266, %v784
      %v793 = vmul.f32 %v262, %v788
      %v794 = vmul.f32 %v267, %v786
      %s795 = scalar_lea.vmem %s3, 24
      %v796 = vld [vmem:[%s795] sm:$0xf]
      %v797 = vpack.c.bf16 %v792, %v792
      %v798 = vpack.c.bf16 %v793, %v793
      %v799 = vpack.c.bf16 %v794, %v794
      %803 = vrot.lane.b32.xlu0 %v797, 96
      %v804 = vpop.permute.xlu0 %803
      %805 = vrot.lane.b32.xlu0 %v798, 96
      %v806 = vpop.permute.xlu0 %805
      %807 = vrot.lane.b32.xlu0 %v799, 96
      %v808 = vpop.permute.xlu0 %807
      %vm809 = vcmask 785408
      %v810 = vsel %vm809, %v804, %v806
      %v811 = vsel %vm809, %v806, %v808
      %v813 = vsel %vm325, %v796, 0
      %v816 = vsel %vm329, %v810, 0
      %v819 = vsel %vm329, %v811, 0
      %821 = vmatprep.subr.bf16.mxu0 %v819
      %822 = vmatpush1.bf16.msra.mxu0 %v816
      %823 = vmatprep.subr.bf16.mxu0 0
      %824 = vmatpush1.bf16.msra.mxu0 0
      %825 = vmatprep.subr.bf16.mxu0 0
      %826 = vmatpush1.bf16.msra.mxu0 0
      %827 = vmatprep.subr.bf16.mxu0 0
      %828 = vmatpush1.bf16.msra.mxu0 0
      %829 = vmatprep.subr.bf16.mxu0 0
      %830 = vmatpush1.bf16.msra.mxu0 0
      %831 = vmatprep.subr.bf16.mxu0 0
      %832 = vmatpush1.bf16.msra.mxu0 0
      %833 = vmatprep.subr.bf16.mxu0 0
      %834 = vmatpush1.bf16.msra.mxu0 0
      %835 = vmatprep.subr.bf16.mxu0 0
      %836 = vmatpush1.bf16.msra.mxu0 0
      %837 = vmatprep.subr.bf16.mxu0 0
      %838 = vmatpush1.bf16.msra.mxu0 0
      %839 = vmatprep.subr.bf16.mxu0 0
      %840 = vmatpush1.bf16.msra.mxu0 0
      %841 = vmatprep.subr.bf16.mxu0 0
      %842 = vmatpush1.bf16.msra.mxu0 0
      %843 = vmatprep.subr.bf16.mxu0 0
      %844 = vmatpush1.bf16.msra.mxu0 0
      %845 = vmatprep.subr.bf16.mxu0 0
      %846 = vmatpush1.bf16.msra.mxu0 0
      %847 = vmatprep.subr.bf16.mxu0 0
      %848 = vmatpush1.bf16.msra.mxu0 0
      %849 = vmatprep.subr.bf16.mxu0 0
      %850 = vmatpush1.bf16.msra.mxu0 0
      %851 = vmatprep.subr.bf16.mxu0 0
      %852 = vmatpush1.bf16.msra.mxu0 0
      %853 = vmatprep.mubr.bf16.mxu0 0
      %854 = vmatmul.mubr.bf16.gmra.mrb[0].mxu0 %v813
      %v855 = vpop.f32.mrb[0].mxu0
      %v856 = vadd.f32 0.0, %v855
      %v857 = vpop.f32.mrb[0].mxu0
      %v858 = vadd.f32 0.0, %v857
      %v859 = vpop.f32.mrb[0].mxu0
      %v860 = vpop.f32.mrb[0].mxu0
      %861 = vdwg.mxu0
      %v862 = vadd.f32 %v770, %v856
      %v863 = vadd.f32 %v771, %v858
      %s864 = scalar_lea.vmem %s4, 14
      %v865 = vld [vmem:[%s864] sm:$0x3]
      %v867 = vlaneseq
      %v868 = vshrl.u32 %v867, 7
      %v869 = vsub.s32 0, %v868
      %v870 = vrot.slane %v865, %v869
      %v871 = vlaneseq
      %v872 = vshrl.u32 %v871, 7
      %v873 = vsub.s32 1, %v872
      %v874 = vrot.slane %v865, %v873
      %875 = vrot.lane.b32.xlu0 %v870, 33
      %v876 = vpop.permute.xlu0 %875
      %877 = vrot.lane.b32.xlu0 %v874, 33
      %v878 = vpop.permute.xlu0 %877
      %vm879 = vcmask 269312
      %v880 = vsel %vm879, %v876, %v878
      %v884 = vmul.f32 %v266, %v876
      %v885 = vmul.f32 %v262, %v880
      %v886 = vmul.f32 %v267, %v878
      %s887 = scalar_lea.vmem %s3, 28
      %v888 = vld [vmem:[%s887] sm:$0xf]
      %v889 = vpack.c.bf16 %v884, %v884
      %v890 = vpack.c.bf16 %v885, %v885
      %v891 = vpack.c.bf16 %v886, %v886
      %895 = vrot.lane.b32.xlu0 %v889, 95
      %v896 = vpop.permute.xlu0 %895
      %897 = vrot.lane.b32.xlu0 %v890, 95
      %v898 = vpop.permute.xlu0 %897
      %899 = vrot.lane.b32.xlu0 %v891, 95
      %v900 = vpop.permute.xlu0 %899
      %vm901 = vcmask 777216
      %v902 = vsel %vm901, %v896, %v898
      %v903 = vsel %vm901, %v898, %v900
      %v905 = vsel %vm325, %v888, 0
      %v908 = vsel %vm329, %v902, 0
      %v911 = vsel %vm329, %v903, 0
      %913 = vmatprep.subr.bf16.mxu0 %v911
      %914 = vmatpush1.bf16.msra.mxu0 %v908
      %915 = vmatprep.subr.bf16.mxu0 0
      %916 = vmatpush1.bf16.msra.mxu0 0
      %917 = vmatprep.subr.bf16.mxu0 0
      %918 = vmatpush1.bf16.msra.mxu0 0
      %919 = vmatprep.subr.bf16.mxu0 0
      %920 = vmatpush1.bf16.msra.mxu0 0
      %921 = vmatprep.subr.bf16.mxu0 0
      %922 = vmatpush1.bf16.msra.mxu0 0
      %923 = vmatprep.subr.bf16.mxu0 0
      %924 = vmatpush1.bf16.msra.mxu0 0
      %925 = vmatprep.subr.bf16.mxu0 0
      %926 = vmatpush1.bf16.msra.mxu0 0
      %927 = vmatprep.subr.bf16.mxu0 0
      %928 = vmatpush1.bf16.msra.mxu0 0
      %929 = vmatprep.subr.bf16.mxu0 0
      %930 = vmatpush1.bf16.msra.mxu0 0
      %931 = vmatprep.subr.bf16.mxu0 0
      %932 = vmatpush1.bf16.msra.mxu0 0
      %933 = vmatprep.subr.bf16.mxu0 0
      %934 = vmatpush1.bf16.msra.mxu0 0
      %935 = vmatprep.subr.bf16.mxu0 0
      %936 = vmatpush1.bf16.msra.mxu0 0
      %937 = vmatprep.subr.bf16.mxu0 0
      %938 = vmatpush1.bf16.msra.mxu0 0
      %939 = vmatprep.subr.bf16.mxu0 0
      %940 = vmatpush1.bf16.msra.mxu0 0
      %941 = vmatprep.subr.bf16.mxu0 0
      %942 = vmatpush1.bf16.msra.mxu0 0
      %943 = vmatprep.subr.bf16.mxu0 0
      %944 = vmatpush1.bf16.msra.mxu0 0
      %945 = vmatprep.mubr.bf16.mxu0 0
      %946 = vmatmul.mubr.bf16.gmra.mrb[0].mxu0 %v905
      %v947 = vpop.f32.mrb[0].mxu0
      %v948 = vadd.f32 0.0, %v947
      %v949 = vpop.f32.mrb[0].mxu0
      %v950 = vadd.f32 0.0, %v949
      %v951 = vpop.f32.mrb[0].mxu0
      %v952 = vpop.f32.mrb[0].mxu0
      %953 = vdwg.mxu0
      %v954 = vadd.f32 %v862, %v948
      %v955 = vadd.f32 %v863, %v950
      %s956 = scalar_lea.vmem %s4, 16
      %v957 = vld [vmem:[%s956] sm:$0x3]
      %v959 = vlaneseq
      %v960 = vshrl.u32 %v959, 7
      %v961 = vsub.s32 0, %v960
      %v962 = vrot.slane %v957, %v961
      %v963 = vlaneseq
      %v964 = vshrl.u32 %v963, 7
      %v965 = vsub.s32 1, %v964
      %v966 = vrot.slane %v957, %v965
      %967 = vrot.lane.b32.xlu0 %v962, 34
      %v968 = vpop.permute.xlu0 %967
      %969 = vrot.lane.b32.xlu0 %v966, 34
      %v970 = vpop.permute.xlu0 %969
      %vm971 = vcmask 277504
      %v972 = vsel %vm971, %v968, %v970
      %v976 = vmul.f32 %v266, %v968
      %v977 = vmul.f32 %v262, %v972
      %v978 = vmul.f32 %v267, %v970
      %s979 = scalar_lea.vmem %s3, 32
      %v980 = vld [vmem:[%s979] sm:$0xf]
      %v981 = vpack.c.bf16 %v976, %v976
      %v982 = vpack.c.bf16 %v977, %v977
      %v983 = vpack.c.bf16 %v978, %v978
      %987 = vrot.lane.b32.xlu0 %v981, 94
      %v988 = vpop.permute.xlu0 %987
      %989 = vrot.lane.b32.xlu0 %v982, 94
      %v990 = vpop.permute.xlu0 %989
      %991 = vrot.lane.b32.xlu0 %v983, 94
      %v992 = vpop.permute.xlu0 %991
      %vm993 = vcmask 769024
      %v994 = vsel %vm993, %v988, %v990
      %v995 = vsel %vm993, %v990, %v992
      %v997 = vsel %vm325, %v980, 0
      %v1000 = vsel %vm329, %v994, 0
      %v1003 = vsel %vm329, %v995, 0
      %1005 = vmatprep.subr.bf16.mxu0 %v1003
      %1006 = vmatpush1.bf16.msra.mxu0 %v1000
      %1007 = vmatprep.subr.bf16.mxu0 0
      %1008 = vmatpush1.bf16.msra.mxu0 0
      %1009 = vmatprep.subr.bf16.mxu0 0
      %1010 = vmatpush1.bf16.msra.mxu0 0
      %1011 = vmatprep.subr.bf16.mxu0 0
      %1012 = vmatpush1.bf16.msra.mxu0 0
      %1013 = vmatprep.subr.bf16.mxu0 0
      %1014 = vmatpush1.bf16.msra.mxu0 0
      %1015 = vmatprep.subr.bf16.mxu0 0
      %1016 = vmatpush1.bf16.msra.mxu0 0
      %1017 = vmatprep.subr.bf16.mxu0 0
      %1018 = vmatpush1.bf16.msra.mxu0 0
      %1019 = vmatprep.subr.bf16.mxu0 0
      %1020 = vmatpush1.bf16.msra.mxu0 0
      %1021 = vmatprep.subr.bf16.mxu0 0
      %1022 = vmatpush1.bf16.msra.mxu0 0
      %1023 = vmatprep.subr.bf16.mxu0 0
      %1024 = vmatpush1.bf16.msra.mxu0 0
      %1025 = vmatprep.subr.bf16.mxu0 0
      %1026 = vmatpush1.bf16.msra.mxu0 0
      %1027 = vmatprep.subr.bf16.mxu0 0
      %1028 = vmatpush1.bf16.msra.mxu0 0
      %1029 = vmatprep.subr.bf16.mxu0 0
      %1030 = vmatpush1.bf16.msra.mxu0 0
      %1031 = vmatprep.subr.bf16.mxu0 0
      %1032 = vmatpush1.bf16.msra.mxu0 0
      %1033 = vmatprep.subr.bf16.mxu0 0
      %1034 = vmatpush1.bf16.msra.mxu0 0
      %1035 = vmatprep.subr.bf16.mxu0 0
      %1036 = vmatpush1.bf16.msra.mxu0 0
      %1037 = vmatprep.mubr.bf16.mxu0 0
      %1038 = vmatmul.mubr.bf16.gmra.mrb[0].mxu0 %v997
      %v1039 = vpop.f32.mrb[0].mxu0
      %v1040 = vadd.f32 0.0, %v1039
      %v1041 = vpop.f32.mrb[0].mxu0
      %v1042 = vadd.f32 0.0, %v1041
      %v1043 = vpop.f32.mrb[0].mxu0
      %v1044 = vpop.f32.mrb[0].mxu0
      %1045 = vdwg.mxu0
      %v1046 = vadd.f32 %v954, %v1040
      %v1047 = vadd.f32 %v955, %v1042
      %v1048 = vmul.f32 %v1046, 0.1
      %v1049 = vmul.f32 %v1047, 0.1
      %v1050 = vmax.f32 %v1046, %v1048
      %v1051 = vmax.f32 %v1047, %v1049
      %1052 = vst [vmem:[%s224] sm:$0xff] %v1050
      %1053 = vst [vmem:[%s224 + $0x8] sm:$0xff] %v1051
      %p1054 = scmp.lt.s32.totalorder %s16, 1
      %s1055 = scalar_select %p1054, %s16, 1
      %s1056 = smul.addr %s1055, 2
      %s1057 = smul.addr %s1056, 8
      %s1058 = scalar_lea.vmem %s5, %s1057
      // Predicated region
      $region41: #{block2d_forward.1} parent=39 // pred_check
        %p1059 = pneg %p144
      $region42: #{block2d_forward.1} parent=39 // pred_check_branch
        %1061 = sbr.rel (%p1059) target = $region44
      $region43: #{block2d_forward.1} parent=39 // pred_region
        _
      $region44: #{block2d_forward.1} parent=39 // pred_fallthru
        _
    $region40: #{block2d_forward.1} parent=5 // pred_fallthru
      _
    %p1062 = scmp.le.s32.totalorder 2, %s11
    // Predicated region
    $region45: #{block2d_forward.1} parent=5 // pred_check
      %p1063 = pneg %p1062
    $region46: #{block2d_forward.1} parent=5 // pred_check_branch
      %1065 = sbr.rel (%p1063) target = $region48
    $region47: #{block2d_forward.1} parent=5 // pred_region
      %s1066 = ssub.s32 %s11, 2
      // Predicated region
      $region49: #{block2d_forward.1} parent=47 // pred_check
        %p1067 = pneg %p150
      $region50: #{block2d_forward.1} parent=47 // pred_check_branch
        %1069 = sbr.rel (%p1067) target = $region52
      $region51: #{block2d_forward.1} parent=47 // pred_region
        %p1070 = scmp.lt.s32.totalorder %s17, 1
        %s1071 = scalar_select %p1070, %s17, 1
        %s1072 = smul.addr %s1071, 2
        %s1073 = smul.addr %s1072, 8
        %s1074 = scalar_lea.vmem %s5, %s1073
      $region52: #{block2d_forward.1} parent=47 // pred_fallthru
        _
    $region48: #{block2d_forward.1} parent=5 // pred_fallthru
      _
  $region6: #{block2d_forward.1} parent=0 // loop_footer
    %s15 = sadd.s32 1, %s11
  $region7: #{block2d_forward.1} parent=0 // loop_footer_branch
    %10 = sbr.rel target = $region3
  $region8: #{block2d_forward.1} parent=0 // loop_exit
    _

</llo_original>
